<compile_context>
chip_gen: v7x
topology: tpu7x:2x2x1
jax: 0.10.0
libtpu: 0.0.40
codegen_flags: <defaults>
</compile_context>

<pallas_src>
from functools import partial

import jax
import jax.numpy as jnp
from jax.experimental import pallas as pl
from jax.experimental.pallas import tpu as pltpu


def _cond_layernorm_kernel(x_ref, g_ref, b_ref, out_ref, *, eps):
    # x_ref: (1, TS, F) tile of one batch row; g_ref/b_ref: (1, 1, F).
    x = x_ref[0].astype(jnp.float32)                       # (TS, F)
    g = g_ref[0]                                           # (1, F)
    b = b_ref[0]                                           # (1, F)

    feat = x.shape[-1]
    mean = jnp.mean(x, axis=-1, keepdims=True)             # (TS, 1)
    diff = x - mean
    # torch.std default uses Bessel's correction (divide by N-1).
    var = jnp.sum(diff * diff, axis=-1, keepdims=True) / (feat - 1)
    std = jnp.sqrt(var)
    # Exact per-row reciprocal: eps is added to std (torch parity), and the
    # kernel is HBM-bound so exact math costs nothing in wall-clock.
    inv = 1.0 / (std + eps)                                # (TS, 1)

    out_ref[0] = ((diff * inv) * g + b).astype(out_ref.dtype)


def _choose_seq_tile(batch, seq, feat, itemsize,
                     target_bytes=2 << 20, min_tiles=4):
    """Byte-targeted, 8-aligned sequence tile; splits further for megacore."""
    row_bytes = feat * itemsize
    ts = (target_bytes // row_bytes) // 8 * 8
    ts = max(8, min(ts, seq))
    # Guarantee enough total grid tiles so both v7x TensorCores get work,
    # as long as the tile stays an 8-row multiple.
    while batch * (-(-seq // ts)) < min_tiles and ts > 8:
        ts = max(8, (ts // 2) // 8 * 8)
    if ts >= seq:
        return seq            # full-extent block is always a legal BlockSpec
    return ts


def conditional_layer_norm(x, condition, gamma, beta, wg, bg, wb, bb,
                           eps=1e-6, target_block_bytes=2 << 20):
    """x: [B, S, F]; condition: [B, C]; wg/wb stored pre-transposed as [C, F]."""
    B, S, F = x.shape

    # Conditional affine params for all batch rows at once (one real (B,C)@(C,F)
    # matmul each, done by XLA) instead of a 1-row MXU matmul per grid step.
    g = (gamma[None, :] + condition @ wg + bg[None, :]).astype(jnp.float32)
    b = (beta[None, :] + condition @ wb + bb[None, :]).astype(jnp.float32)
    g3 = g.reshape(B, 1, F)
    b3 = b.reshape(B, 1, F)

    itemsize = jnp.dtype(x.dtype).itemsize
    ts = _choose_seq_tile(B, S, F, itemsize, target_bytes=target_block_bytes)
    grid = (B, pl.cdiv(S, ts))

    cost = pl.CostEstimate(
        flops=7 * B * S * F,
        transcendentals=2 * B * S,                  # sqrt + reciprocal per row
        bytes_accessed=2 * B * S * F * itemsize + 2 * B * F * 4,
    )

    return pl.pallas_call(
        partial(_cond_layernorm_kernel, eps=eps),
        out_shape=jax.ShapeDtypeStruct((B, S, F), x.dtype),
        grid=grid,
        in_specs=[
            pl.BlockSpec((1, ts, F), lambda bi, si: (bi, si, 0)),  # X tile
            pl.BlockSpec((1, 1, F), lambda bi, si: (bi, 0, 0)),    # gamma + Lin_g(cond)
            pl.BlockSpec((1, 1, F), lambda bi, si: (bi, 0, 0)),    # beta  + Lin_b(cond)
        ],
        out_specs=pl.BlockSpec((1, ts, F), lambda bi, si: (bi, si, 0)),
        compiler_params=pltpu.CompilerParams(
            dimension_semantics=("parallel", "parallel"),
            # Headroom for double-buffered ~2 MiB in/out blocks + f32 temps on
            # v5e's 16 MiB scoped default; well under v7x's 64 MiB physical.
            vmem_limit_bytes=32 << 20,
        ),
        cost_estimate=cost,
    )(x, g3, b3)


def _reference(x, condition, gamma, beta, wg, bg, wb, bb, eps=1e-6):
    # Pure-JAX reference mirroring the PyTorch forward (condition.dim() < x.dim()).
    mean = jnp.mean(x, axis=-1, keepdims=True)
    var = jnp.sum((x - mean) ** 2, axis=-1, keepdims=True) / (x.shape[-1] - 1)
    std = jnp.sqrt(var)
    cond_gamma = condition @ wg + bg
    cond_beta = condition @ wb + bb
    g = (gamma + cond_gamma)[:, None, :]
    b = (beta + cond_beta)[:, None, :]
    return g * (x - mean) / (std + eps) + b


if __name__ == "__main__":
    # Small but lane-dense shapes: F is a multiple of 128; the tile chooser
    # splits S so the grid has >= 4 tiles (exercises S tiling + megacore split).
    B, S, F, C = 2, 256, 256, 8
    key = jax.random.PRNGKey(0)
    kx, kc, kwg, kbg, kwb, kbb = jax.random.split(key, 6)

    x = jax.random.normal(kx, (B, S, F), dtype=jnp.float32)
    condition = jax.random.normal(kc, (B, C), dtype=jnp.float32)

    # Parameters (shapes from __init__).  gamma=ones / beta=zeros as in the
    # module; the conditional-projection weights get small nonzero values so
    # the conditional branch is actually exercised (the module inits them to 0).
    gamma = jnp.ones((F,), dtype=jnp.float32)
    beta = jnp.zeros((F,), dtype=jnp.float32)
    wg = 0.05 * jax.random.normal(kwg, (C, F), dtype=jnp.float32)   # Linear weight^T
    bg = 0.05 * jax.random.normal(kbg, (F,), dtype=jnp.float32)
    wb = 0.05 * jax.random.normal(kwb, (C, F), dtype=jnp.float32)
    bb = 0.05 * jax.random.normal(kbb, (F,), dtype=jnp.float32)

    out = conditional_layer_norm(x, condition, gamma, beta, wg, bg, wb, bb)
    out = jax.block_until_ready(out)

    ref = _reference(x, condition, gamma, beta, wg, bg, wb, bb)
    assert out.shape == (B, S, F)
    # Exact (non-approx) math -> tight tolerance.
    assert jnp.allclose(out, ref, atol=1e-4, rtol=1e-4), "mismatch vs reference"

    print("KERNEL_OK")
</pallas_src>

<mosaic_0001>
module attributes {stable_mosaic.version = 11 : i64} {
  func.func @_cond_layernorm_kernel(%arg0: i32, %arg1: i32, %arg2: memref<1x128x256xf32, #tpu.memory_space<vmem>>, %arg3: memref<1x1x256xf32, #tpu.memory_space<vmem>>, %arg4: memref<1x1x256xf32, #tpu.memory_space<vmem>>, %arg5: memref<1x128x256xf32, #tpu.memory_space<vmem>>) attributes {dimension_semantics = [#tpu.dimension_semantics<parallel>, #tpu.dimension_semantics<parallel>], iteration_bounds = array<i64: 2, 2>, scalar_prefetch = 0 : i64, scratch_operands = 0 : i64, tpu.core_type = #tpu.core_type<tc>, window_params = [{transform_indices = @transform_0, window_bounds = array<i64: 1, 128, 256>}, {transform_indices = @transform_1, window_bounds = array<i64: 1, 1, 256>}, {transform_indices = @transform_2, window_bounds = array<i64: 1, 1, 256>}, {transform_indices = @transform_3, window_bounds = array<i64: 1, 128, 256>}]} {
    %c0 = arith.constant 0 : index
    %c0_0 = arith.constant 0 : index
    %c0_1 = arith.constant 0 : index
    %0 = vector.load %arg2[%c0, %c0_0, %c0_1] : memref<1x128x256xf32, #tpu.memory_space<vmem>>, vector<1x128x256xf32>
    %1 = vector.shape_cast %0 : vector<1x128x256xf32> to vector<128x256xf32>
    %c0_2 = arith.constant 0 : index
    %c0_3 = arith.constant 0 : index
    %c0_4 = arith.constant 0 : index
    %2 = vector.load %arg3[%c0_2, %c0_3, %c0_4] : memref<1x1x256xf32, #tpu.memory_space<vmem>>, vector<1x1x256xf32>
    %3 = vector.shape_cast %2 : vector<1x1x256xf32> to vector<1x256xf32>
    %c0_5 = arith.constant 0 : index
    %c0_6 = arith.constant 0 : index
    %c0_7 = arith.constant 0 : index
    %4 = vector.load %arg4[%c0_5, %c0_6, %c0_7] : memref<1x1x256xf32, #tpu.memory_space<vmem>>, vector<1x1x256xf32>
    %5 = vector.shape_cast %4 : vector<1x1x256xf32> to vector<1x256xf32>
    %cst = arith.constant dense<0.000000e+00> : vector<128xf32>
    %6 = vector.multi_reduction <add>, %1, %cst [1] : vector<128x256xf32> to vector<128xf32>
    %7 = vector.shape_cast %6 : vector<128xf32> to vector<128x1xf32>
    %cst_8 = arith.constant 2.560000e+02 : f32
    %8 = vector.broadcast %cst_8 : f32 to vector<128x1xf32>
    %9 = arith.divf %7, %8 : vector<128x1xf32>
    %10 = vector.broadcast %9 : vector<128x1xf32> to vector<128x256xf32>
    %11 = arith.subf %1, %10 : vector<128x256xf32>
    %12 = arith.mulf %11, %11 : vector<128x256xf32>
    %cst_9 = arith.constant dense<0.000000e+00> : vector<128xf32>
    %13 = vector.multi_reduction <add>, %12, %cst_9 [1] : vector<128x256xf32> to vector<128xf32>
    %14 = vector.shape_cast %13 : vector<128xf32> to vector<128x1xf32>
    %cst_10 = arith.constant 2.550000e+02 : f32
    %15 = vector.broadcast %cst_10 : f32 to vector<128x1xf32>
    %16 = arith.divf %14, %15 : vector<128x1xf32>
    %17 = math.sqrt %16 : vector<128x1xf32>
    %cst_11 = arith.constant 9.99999997E-7 : f32
    %18 = vector.broadcast %cst_11 : f32 to vector<128x1xf32>
    %19 = arith.addf %17, %18 : vector<128x1xf32>
    %cst_12 = arith.constant 1.000000e+00 : f32
    %20 = vector.broadcast %cst_12 : f32 to vector<128x1xf32>
    %21 = arith.divf %20, %19 : vector<128x1xf32>
    %22 = vector.broadcast %21 : vector<128x1xf32> to vector<128x256xf32>
    %23 = arith.mulf %11, %22 : vector<128x256xf32>
    %24 = vector.broadcast %3 : vector<1x256xf32> to vector<128x256xf32>
    %25 = arith.mulf %23, %24 : vector<128x256xf32>
    %26 = vector.broadcast %5 : vector<1x256xf32> to vector<128x256xf32>
    %27 = arith.addf %25, %26 : vector<128x256xf32>
    %c0_13 = arith.constant 0 : index
    %c0_14 = arith.constant 0 : index
    %c0_15 = arith.constant 0 : index
    %28 = vector.load %arg5[%c0_13, %c0_14, %c0_15] : memref<1x128x256xf32, #tpu.memory_space<vmem>>, vector<1x128x256xf32>
    %29 = vector.shape_cast %28 : vector<1x128x256xf32> to vector<128x256xf32>
    %30 = vector.shape_cast %27 : vector<128x256xf32> to vector<1x128x256xf32>
    tpu.vector_store %arg5[%c0_13, %c0_14, %c0_15], %30 {strides = array<i32>} : memref<1x128x256xf32, #tpu.memory_space<vmem>>, vector<1x128x256xf32>,
    return
  }
  func.func @transform_0(%arg0: i32, %arg1: i32) -> (i32, i32, i32) {
    %c0_i32 = arith.constant 0 : i32
    %c0_i32_0 = arith.constant 0 : i32
    return %arg0, %arg1, %c0_i32 : i32, i32, i32
  }
  func.func @transform_1(%arg0: i32, %arg1: i32) -> (i32, i32, i32) {
    %c0_i32 = arith.constant 0 : i32
    %c0_i32_0 = arith.constant 0 : i32
    %c0_i32_1 = arith.constant 0 : i32
    return %arg0, %c0_i32, %c0_i32_0 : i32, i32, i32
  }
  func.func @transform_2(%arg0: i32, %arg1: i32) -> (i32, i32, i32) {
    %c0_i32 = arith.constant 0 : i32
    %c0_i32_0 = arith.constant 0 : i32
    %c0_i32_1 = arith.constant 0 : i32
    return %arg0, %c0_i32, %c0_i32_0 : i32, i32, i32
  }
  func.func @transform_3(%arg0: i32, %arg1: i32) -> (i32, i32, i32) {
    %c0_i32 = arith.constant 0 : i32
    %c0_i32_0 = arith.constant 0 : i32
    return %arg0, %arg1, %c0_i32 : i32, i32, i32
  }
}

</mosaic_0001>

<llo_original>
// kernel: tpu_custom_call.1
$region0: #{tpu_custom_call.1}
  #allocation0 [shape = 'u32[]', space=smem, size = 0x4, offset = 0x4, fixed_abs, tag = 'smem constant byte address 0x4 - core index']
  #allocation1 [shape = 'u32[144,128]{1,0:T(1,128)}', space=vmem, size = 0x12000, scoped, tag = 'internal scratch']
  %s0 = inlined_call_operand.hbm [shape: f32[2,256,256], index: 0, kind: input, shape index: {}]
  %s1 = inlined_call_operand.hbm [shape: f32[2,1,256], index: 1, kind: input, shape index: {}]
  %s2 = inlined_call_operand.vmem [shape: f32[2,1,256], index: 2, kind: input, shape index: {}]
  %s3 = inlined_call_operand.hbm [shape: f32[2,256,256], index: 3, kind: output, shape index: {}]
  %s4 = sld [smem:[#allocation0]]
  $region53: #{tpu_custom_call.1} parent=0
    _
  %s6 = ssub.s32 1, %s4
  %s7 = scalar_select 0, %s6, %s4
  $region1: #{tpu_custom_call.1} parent=0
    #allocation2 [shape = 'u8[262144]{0}', space=vmem, size = 0x40000, scoped, tag = 'input window, operand 0']
    #allocation3 [shape = 's32[2]{0}', space=sflag, size = 0x8, scoped, tag = 'scoped memory for tpu_custom_call.1']
    #allocation4 [shape = 's32[2]{0}', space=sflag, size = 0x8, scoped, tag = 'scoped memory for tpu_custom_call.1']
    #allocation5 [shape = 'u8[2048]{0}', space=vmem, size = 0x800, scoped, tag = 'input window, operand 1']
    #allocation6 [shape = 's32[2]{0}', space=sflag, size = 0x8, scoped, tag = 'scoped memory for tpu_custom_call.1']
    #allocation7 [shape = 'u8[262144]{0}', space=vmem, size = 0x40000, scoped, tag = 'output window, operand 0']
    %8 = vsyncpa [#allocation3], 0
    %s9 = scalar_lea.sflag [#allocation3], 1
    %10 = vsyncpa %s9, 0
    %11 = vsyncpa [#allocation6], 0
    %s12 = scalar_lea.sflag [#allocation6], 1
    %13 = vsyncpa %s12, 0
    %14 = vsyncpa [#allocation4], 0
    %s15 = scalar_lea.sflag [#allocation4], 1
    %16 = vsyncpa %s15, 0
    loop: start=0, step=1, limit=6
    $region2: #{tpu_custom_call.1} parent=1 // loop_pre_header
      _
    $region3: #{tpu_custom_call.1} parent=1 // loop_header
      %s18 = sphi 0, %s22
      %p19 = scmp.ge.s32.totalorder %s18, 6
      %s25 = sphi 0, %s37
      %s26 = sphi 0, %s33
      %s27 = sphi 0, %s25
      %s28 = sphi 0, %s26
      %s29 = sphi 0, %s27
      %s30 = sphi 0, %s28
      %s42 = sphi 0, %s44
      %s45 = sphi 0, %s42
      %s46 = sphi 0, %s45
      %s62 = sphi 0, %s46
      %s68 = sphi 0, %s70
      %s71 = sphi 0, %s68
      %s72 = sphi 0, %s71
      %s88 = sphi 0, %s72
      %s94 = sphi 0, %s96
      %s97 = sphi 0, %s94
      %s98 = sphi 0, %s97
      %s114 = sphi 0, %s98
      %s122 = sphi 0, %s124
      %s125 = sphi 0, %s122
      %s126 = sphi 0, %s125
      %s142 = sphi 0, %s126
    $region4: #{tpu_custom_call.1} parent=1 // loop_header_branch
      %21 = sbr.rel (%p19) target = $region8
    $region5: #{tpu_custom_call.1} parent=1 // loop_body
      %s23 = ssub.s32 %s18, 1
      %s24 = ssub.s32 %s18, 2
      %s31 = sadd.s32 1, %s26
      %p32 = scmp.ge.s32.totalorder %s31, 2
      %s33 = scalar_select %p32, 0, %s31
      %s34 = sadd.s32 1, %s25
      %s35 = scalar_select %p32, %s34, %s25
      %p36 = scmp.ge.s32.totalorder %s35, 2
      %s37 = scalar_select %p36, 0, %s35
      %s38 = ssub.s32 %s25, %s37
      %s39 = ssub.s32 %s26, %s33
      %s40 = sor.u32 %s38, %s39
      %p41 = scmp.eq.s32.totalorder %s40, 0
      %s43 = sadd.s32 %s42, 1
      %s44 = scalar_select %p41, %s42, %s43
      %p47 = pneg %p41
      %p48 = scmp.eq.s32.totalorder %s18, 3
      %p49 = por %p47, %p48
      %p50 = scmp.ne.s32.totalorder %s42, %s45
      %p51 = scmp.eq.s32.totalorder %s18, 0
      %p52 = por %p50, %p51
      %p53 = scmp.ne.s32.totalorder %s42, %s45
      %p54 = scmp.eq.s32.totalorder %s23, 3
      %p55 = por %p53, %p54
      %p56 = scmp.ne.s32.totalorder %s45, %s46
      %p57 = scmp.eq.s32.totalorder %s23, 0
      %p58 = por %p56, %p57
      %p59 = scmp.ne.s32.totalorder %s45, %s46
      %p60 = scmp.eq.s32.totalorder %s24, 3
      %p61 = por %p59, %p60
      %p63 = scmp.ne.s32.totalorder %s46, %s62
      %p64 = scmp.eq.s32.totalorder %s24, 0
      %p65 = por %p63, %p64
      %s66 = ssub.s32 %s25, %s37
      %p67 = scmp.eq.s32.totalorder %s66, 0
      %s69 = sadd.s32 %s68, 1
      %s70 = scalar_select %p67, %s68, %s69
      %p73 = pneg %p67
      %p74 = scmp.eq.s32.totalorder %s18, 3
      %p75 = por %p73, %p74
      %p76 = scmp.ne.s32.totalorder %s68, %s71
      %p77 = scmp.eq.s32.totalorder %s18, 0
      %p78 = por %p76, %p77
      %p79 = scmp.ne.s32.totalorder %s68, %s71
      %p80 = scmp.eq.s32.totalorder %s23, 3
      %p81 = por %p79, %p80
      %p82 = scmp.ne.s32.totalorder %s71, %s72
      %p83 = scmp.eq.s32.totalorder %s23, 0
      %p84 = por %p82, %p83
      %p85 = scmp.ne.s32.totalorder %s71, %s72
      %p86 = scmp.eq.s32.totalorder %s24, 3
      %p87 = por %p85, %p86
      %p89 = scmp.ne.s32.totalorder %s72, %s88
      %p90 = scmp.eq.s32.totalorder %s24, 0
      %p91 = por %p89, %p90
      %s92 = ssub.s32 %s25, %s37
      %p93 = scmp.eq.s32.totalorder %s92, 0
      %s95 = sadd.s32 %s94, 1
      %s96 = scalar_select %p93, %s94, %s95
      %p99 = pneg %p93
      %p100 = scmp.eq.s32.totalorder %s18, 3
      %p101 = por %p99, %p100
      %p102 = scmp.ne.s32.totalorder %s94, %s97
      %p103 = scmp.eq.s32.totalorder %s18, 0
      %p104 = por %p102, %p103
      %p105 = scmp.ne.s32.totalorder %s94, %s97
      %p106 = scmp.eq.s32.totalorder %s23, 3
      %p107 = por %p105, %p106
      %p108 = scmp.ne.s32.totalorder %s97, %s98
      %p109 = scmp.eq.s32.totalorder %s23, 0
      %p110 = por %p108, %p109
      %p111 = scmp.ne.s32.totalorder %s97, %s98
      %p112 = scmp.eq.s32.totalorder %s24, 3
      %p113 = por %p111, %p112
      %p115 = scmp.ne.s32.totalorder %s98, %s114
      %p116 = scmp.eq.s32.totalorder %s24, 0
      %p117 = por %p115, %p116
      %s118 = ssub.s32 %s25, %s37
      %s119 = ssub.s32 %s26, %s33
      %s120 = sor.u32 %s118, %s119
      %p121 = scmp.eq.s32.totalorder %s120, 0
      %s123 = sadd.s32 %s122, 1
      %s124 = scalar_select %p121, %s122, %s123
      %p127 = pneg %p121
      %p128 = scmp.eq.s32.totalorder %s18, 3
      %p129 = por %p127, %p128
      %p130 = scmp.ne.s32.totalorder %s122, %s125
      %p131 = scmp.eq.s32.totalorder %s18, 0
      %p132 = por %p130, %p131
      %p133 = scmp.ne.s32.totalorder %s122, %s125
      %p134 = scmp.eq.s32.totalorder %s23, 3
      %p135 = por %p133, %p134
      %p136 = scmp.ne.s32.totalorder %s125, %s126
      %p137 = scmp.eq.s32.totalorder %s23, 0
      %p138 = por %p136, %p137
      %p139 = scmp.ne.s32.totalorder %s125, %s126
      %p140 = scmp.eq.s32.totalorder %s24, 3
      %p141 = por %p139, %p140
      %p143 = scmp.ne.s32.totalorder %s126, %s142
      %p144 = scmp.eq.s32.totalorder %s24, 0
      %p145 = por %p143, %p144
      %p146 = scmp.le.s32.totalorder 1, %s18
      %p147 = scmp.lt.s32.totalorder %s18, 5
      %p148 = pnand %p146, %p147
      %p149 = pneg %p148
      // Predicated region
      $region9: #{tpu_custom_call.1} parent=5 // pred_check
        _
      $region10: #{tpu_custom_call.1} parent=5 // pred_check_branch
        %151 = sbr.rel (%p148) target = $region12
      $region11: #{tpu_custom_call.1} parent=5 // pred_region
        %s152 = ssub.s32 %s18, 1
      $region12: #{tpu_custom_call.1} parent=5 // pred_fallthru
        _
      %p153 = scmp.lt.s32.totalorder %s18, 4
      // Predicated region
      $region13: #{tpu_custom_call.1} parent=5 // pred_check
        %p154 = pneg %p153
      $region14: #{tpu_custom_call.1} parent=5 // pred_check_branch
        %156 = sbr.rel (%p154) target = $region16
      $region15: #{tpu_custom_call.1} parent=5 // pred_region
        // Predicated region
        $region17: #{tpu_custom_call.1} parent=15 // pred_check
          %p157 = pneg %p52
        $region18: #{tpu_custom_call.1} parent=15 // pred_check_branch
          %159 = sbr.rel (%p157) target = $region20
        $region19: #{tpu_custom_call.1} parent=15 // pred_region
          %s160 = sand.u32 %s42, 1
          %s161 = scalar_lea.sflag [#allocation3], %s160
          %s162 = sand.u32 %s42, 1
          %s163 = smul.addr %s162, 256
          %s164 = scalar_lea.vmem [#allocation2], %s163
          %s165 = smul.u32 16, %s26
          %s167 = ssub.s32 4096, 4096
          %168 = vsyncadd %s161, %s167
          %s169 = smul.addr %s165, 2
          %s170 = smul.addr %s25, 64
          %s171 = sadd.s32 %s169, %s170
          %s172 = smul.addr %s171, 128
          %s173 = scalar_lea.hbm %s0, %s172
          %s174 = sshll.u32 %s164, 4
          %s175 = int_to_ptr.vmem [resolvable:$true] %s174
          %180 = dma.hbm_to_vmem [thread:$0]  %s173, 4096, %s175, %s161, 256, 256, 16
        $region20: #{tpu_custom_call.1} parent=15 // pred_fallthru
          _
        // Predicated region
        $region21: #{tpu_custom_call.1} parent=15 // pred_check
          %p181 = pneg %p78
        $region22: #{tpu_custom_call.1} parent=15 // pred_check_branch
          %183 = sbr.rel (%p181) target = $region24
        $region23: #{tpu_custom_call.1} parent=15 // pred_region
          %s184 = sand.u32 %s68, 1
          %s185 = scalar_lea.sflag [#allocation6], %s184
          %s186 = sand.u32 %s68, 1
          %s187 = smul.addr %s186, 2
          %s188 = scalar_lea.vmem [#allocation5], %s187
          %s190 = ssub.s32 32, 32
          %191 = vsyncadd %s185, %s190
          %s192 = smul.addr %s25, 2
          %s193 = smul.addr %s192, 16
          %s194 = scalar_lea.hbm %s1, %s193
          %s196 = sshll.u32 %s188, 4
          %s197 = int_to_ptr.vmem [resolvable:$true] %s196
          %199 = dma.hbm_to_vmem [thread:$0]  %s194, 32, %s197, %s185
        $region24: #{tpu_custom_call.1} parent=15 // pred_fallthru
          _
        // Predicated region
        $region25: #{tpu_custom_call.1} parent=15 // pred_check
          %p200 = pneg %p104
        $region26: #{tpu_custom_call.1} parent=15 // pred_check_branch
          %202 = sbr.rel (%p200) target = $region28
        $region27: #{tpu_custom_call.1} parent=15 // pred_region
          %p203 = scmp.lt.s32.totalorder %s25, 1
          %s204 = scalar_select %p203, %s25, 1
          %s205 = smul.addr %s204, 2
          %s206 = scalar_lea.vmem %s2, %s205
        $region28: #{tpu_custom_call.1} parent=15 // pred_fallthru
          _
      $region16: #{tpu_custom_call.1} parent=5 // pred_fallthru
        _
      %p207 = scmp.le.s32.totalorder 1, %s18
      %p208 = scmp.lt.s32.totalorder %s18, 5
      %p209 = pnand %p207, %p208
      %p210 = pneg %p209
      // Predicated region
      $region29: #{tpu_custom_call.1} parent=5 // pred_check
        _
      $region30: #{tpu_custom_call.1} parent=5 // pred_check_branch
        %212 = sbr.rel (%p209) target = $region32
      $region31: #{tpu_custom_call.1} parent=5 // pred_region
        %s213 = ssub.s32 %s18, 1
        %s214 = sand.u32 %s45, 1
        %s215 = scalar_lea.sflag [#allocation3], %s214
        %s216 = sand.u32 %s45, 1
        %s217 = smul.addr %s216, 256
        %s218 = scalar_lea.vmem [#allocation2], %s217
        // Predicated region
        $region33: #{tpu_custom_call.1} parent=31 // pred_check
          %p219 = pneg %p58
        $region34: #{tpu_custom_call.1} parent=31 // pred_check_branch
          %221 = sbr.rel (%p219) target = $region36
        $region35: #{tpu_custom_call.1} parent=31 // pred_region
          %222 = dma.done %s215, 4096
        $region36: #{tpu_custom_call.1} parent=31 // pred_fallthru
          _
        %s223 = sand.u32 %s71, 1
        %s224 = scalar_lea.sflag [#allocation6], %s223
        %s225 = sand.u32 %s71, 1
        %s226 = smul.addr %s225, 2
        %s227 = scalar_lea.vmem [#allocation5], %s226
        // Predicated region
        $region37: #{tpu_custom_call.1} parent=31 // pred_check
          %p228 = pneg %p84
        $region38: #{tpu_custom_call.1} parent=31 // pred_check_branch
          %230 = sbr.rel (%p228) target = $region40
        $region39: #{tpu_custom_call.1} parent=31 // pred_region
          %231 = dma.done %s224, 32
        $region40: #{tpu_custom_call.1} parent=31 // pred_fallthru
          _
        %s232 = sand.u32 %s45, 1
        %s233 = scalar_lea.sflag [#allocation3], %s232
        %s234 = sand.u32 %s45, 1
        %s235 = smul.addr %s234, 256
        %s236 = scalar_lea.vmem [#allocation2], %s235
        %p237 = pneg %p58
        %p238 = pneg %p55
        %s239 = sand.u32 %s71, 1
        %s240 = scalar_lea.sflag [#allocation6], %s239
        %s241 = sand.u32 %s71, 1
        %s242 = smul.addr %s241, 2
        %s243 = scalar_lea.vmem [#allocation5], %s242
        %p244 = pneg %p84
        %p245 = pneg %p81
        %p246 = scmp.lt.s32.totalorder %s27, 1
        %s247 = scalar_select %p246, %s27, 1
        %s248 = smul.addr %s247, 2
        %s249 = scalar_lea.vmem %s2, %s248
        %p250 = pneg %p110
        %p251 = pneg %p107
        %p252 = pneg %p138
        %p253 = pneg %p135
        %s254 = sand.u32 %s125, 1
        %s255 = scalar_lea.sflag [#allocation4], %s254
        %s256 = sand.u32 %s125, 1
        %s257 = smul.addr %s256, 256
        %s258 = scalar_lea.vmem [#allocation7], %s257
        %s259 = smul.u32 16, %s28
        %p260 = scmp.lt.s32.totalorder %s27, 1
        %s261 = scalar_select %p260, %s27, 1
        %s262 = smul.addr %s261, 2
        %s263 = scalar_lea.vmem %s2, %s262
        %s264 = smul.u32 16, %s28
        %v265 = vld [vmem:[%s218] sm:$0xff]
        %v266 = vld [vmem:[%s218 + $0x8] sm:$0xff]
        %v267 = vld [vmem:[%s218 + $0x10] sm:$0xff]
        %v268 = vld [vmem:[%s218 + $0x18] sm:$0xff]
        %v269 = vld [vmem:[%s218 + $0x20] sm:$0xff]
        %v270 = vld [vmem:[%s218 + $0x28] sm:$0xff]
        %v271 = vld [vmem:[%s218 + $0x30] sm:$0xff]
        %v272 = vld [vmem:[%s218 + $0x38] sm:$0xff]
        %v273 = vld [vmem:[%s218 + $0x40] sm:$0xff]
        %v274 = vld [vmem:[%s218 + $0x48] sm:$0xff]
        %v275 = vld [vmem:[%s218 + $0x50] sm:$0xff]
        %v276 = vld [vmem:[%s218 + $0x58] sm:$0xff]
        %v277 = vld [vmem:[%s218 + $0x60] sm:$0xff]
        %v278 = vld [vmem:[%s218 + $0x68] sm:$0xff]
        %v279 = vld [vmem:[%s218 + $0x70] sm:$0xff]
        %v280 = vld [vmem:[%s218 + $0x78] sm:$0xff]
        %v281 = vld [vmem:[%s218 + $0x80] sm:$0xff]
        %v282 = vld [vmem:[%s218 + $0x88] sm:$0xff]
        %v283 = vld [vmem:[%s218 + $0x90] sm:$0xff]
        %v284 = vld [vmem:[%s218 + $0x98] sm:$0xff]
        %v285 = vld [vmem:[%s218 + $0xa0] sm:$0xff]
        %v286 = vld [vmem:[%s218 + $0xa8] sm:$0xff]
        %v287 = vld [vmem:[%s218 + $0xb0] sm:$0xff]
        %v288 = vld [vmem:[%s218 + $0xb8] sm:$0xff]
        %v289 = vld [vmem:[%s218 + $0xc0] sm:$0xff]
        %v290 = vld [vmem:[%s218 + $0xc8] sm:$0xff]
        %v291 = vld [vmem:[%s218 + $0xd0] sm:$0xff]
        %v292 = vld [vmem:[%s218 + $0xd8] sm:$0xff]
        %v293 = vld [vmem:[%s218 + $0xe0] sm:$0xff]
        %v294 = vld [vmem:[%s218 + $0xe8] sm:$0xff]
        %v295 = vld [vmem:[%s218 + $0xf0] sm:$0xff]
        %v296 = vld [vmem:[%s218 + $0xf8] sm:$0xff]
        %v297 = vld [vmem:[%s227] sm:$0x3]
        %v298 = vld [vmem:[%s263] sm:$0x3]
        %v299 = vadd.f32 %v265, %v266
        %300 = vadd.xlane.f32.xlu0 %v299
        %v301 = vpop.xlane.xlu0 %300
        %v302 = vadd.f32 %v267, %v268
        %303 = vadd.xlane.f32.xlu0 %v302
        %v304 = vpop.xlane.xlu0 %303
        %v305 = vadd.f32 %v269, %v270
        %306 = vadd.xlane.f32.xlu0 %v305
        %v307 = vpop.xlane.xlu0 %306
        %v308 = vadd.f32 %v271, %v272
        %309 = vadd.xlane.f32.xlu0 %v308
        %v310 = vpop.xlane.xlu0 %309
        %v311 = vadd.f32 %v273, %v274
        %312 = vadd.xlane.f32.xlu0 %v311
        %v313 = vpop.xlane.xlu0 %312
        %v314 = vadd.f32 %v275, %v276
        %315 = vadd.xlane.f32.xlu0 %v314
        %v316 = vpop.xlane.xlu0 %315
        %v317 = vadd.f32 %v277, %v278
        %318 = vadd.xlane.f32.xlu0 %v317
        %v319 = vpop.xlane.xlu0 %318
        %v320 = vadd.f32 %v279, %v280
        %321 = vadd.xlane.f32.xlu0 %v320
        %v322 = vpop.xlane.xlu0 %321
        %v323 = vadd.f32 %v281, %v282
        %324 = vadd.xlane.f32.xlu0 %v323
        %v325 = vpop.xlane.xlu0 %324
        %v326 = vadd.f32 %v283, %v284
        %327 = vadd.xlane.f32.xlu0 %v326
        %v328 = vpop.xlane.xlu0 %327
        %v329 = vadd.f32 %v285, %v286
        %330 = vadd.xlane.f32.xlu0 %v329
        %v331 = vpop.xlane.xlu0 %330
        %v332 = vadd.f32 %v287, %v288
        %333 = vadd.xlane.f32.xlu0 %v332
        %v334 = vpop.xlane.xlu0 %333
        %v335 = vadd.f32 %v289, %v290
        %336 = vadd.xlane.f32.xlu0 %v335
        %v337 = vpop.xlane.xlu0 %336
        %v338 = vadd.f32 %v291, %v292
        %339 = vadd.xlane.f32.xlu0 %v338
        %v340 = vpop.xlane.xlu0 %339
        %v341 = vadd.f32 %v293, %v294
        %342 = vadd.xlane.f32.xlu0 %v341
        %v343 = vpop.xlane.xlu0 %342
        %v344 = vadd.f32 %v295, %v296
        %345 = vadd.xlane.f32.xlu0 %v344
        %v346 = vpop.xlane.xlu0 %345
        %v347 = vrcp.pop 256.0
        %v348 = vmul.f32 %v301, %v347
        %v349 = vmul.f32 %v304, %v347
        %v350 = vmul.f32 %v307, %v347
        %v351 = vmul.f32 %v310, %v347
        %v352 = vmul.f32 %v313, %v347
        %v353 = vmul.f32 %v316, %v347
        %v354 = vmul.f32 %v319, %v347
        %v355 = vmul.f32 %v322, %v347
        %v356 = vmul.f32 %v325, %v347
        %v357 = vmul.f32 %v328, %v347
        %v358 = vmul.f32 %v331, %v347
        %v359 = vmul.f32 %v334, %v347
        %v360 = vmul.f32 %v337, %v347
        %v361 = vmul.f32 %v340, %v347
        %v362 = vmul.f32 %v343, %v347
        %v363 = vmul.f32 %v346, %v347
        %v364 = vsub.f32 %v265, %v348
        %v365 = vsub.f32 %v266, %v348
        %v366 = vsub.f32 %v267, %v349
        %v367 = vsub.f32 %v268, %v349
        %v368 = vsub.f32 %v269, %v350
        %v369 = vsub.f32 %v270, %v350
        %v370 = vsub.f32 %v271, %v351
        %v371 = vsub.f32 %v272, %v351
        %v372 = vsub.f32 %v273, %v352
        %v373 = vsub.f32 %v274, %v352
        %v374 = vsub.f32 %v275, %v353
        %v375 = vsub.f32 %v276, %v353
        %v376 = vsub.f32 %v277, %v354
        %v377 = vsub.f32 %v278, %v354
        %v378 = vsub.f32 %v279, %v355
        %v379 = vsub.f32 %v280, %v355
        %v380 = vsub.f32 %v281, %v356
        %v381 = vsub.f32 %v282, %v356
        %v382 = vsub.f32 %v283, %v357
        %v383 = vsub.f32 %v284, %v357
        %v384 = vsub.f32 %v285, %v358
        %v385 = vsub.f32 %v286, %v358
        %v386 = vsub.f32 %v287, %v359
        %v387 = vsub.f32 %v288, %v359
        %v388 = vsub.f32 %v289, %v360
        %v389 = vsub.f32 %v290, %v360
        %v390 = vsub.f32 %v291, %v361
        %v391 = vsub.f32 %v292, %v361
        %v392 = vsub.f32 %v293, %v362
        %v393 = vsub.f32 %v294, %v362
        %v394 = vsub.f32 %v295, %v363
        %v395 = vsub.f32 %v296, %v363
        %v396 = vmul.f32 %v364, %v364
        %v397 = vmul.f32 %v365, %v365
        %v398 = vmul.f32 %v366, %v366
        %v399 = vmul.f32 %v367, %v367
        %v400 = vmul.f32 %v368, %v368
        %v401 = vmul.f32 %v369, %v369
        %v402 = vmul.f32 %v370, %v370
        %v403 = vmul.f32 %v371, %v371
        %v404 = vmul.f32 %v372, %v372
        %v405 = vmul.f32 %v373, %v373
        %v406 = vmul.f32 %v374, %v374
        %v407 = vmul.f32 %v375, %v375
        %v408 = vmul.f32 %v376, %v376
        %v409 = vmul.f32 %v377, %v377
        %v410 = vmul.f32 %v378, %v378
        %v411 = vmul.f32 %v379, %v379
        %v412 = vmul.f32 %v380, %v380
        %v413 = vmul.f32 %v381, %v381
        %v414 = vmul.f32 %v382, %v382
        %v415 = vmul.f32 %v383, %v383
        %v416 = vmul.f32 %v384, %v384
        %v417 = vmul.f32 %v385, %v385
        %v418 = vmul.f32 %v386, %v386
        %v419 = vmul.f32 %v387, %v387
        %v420 = vmul.f32 %v388, %v388
        %v421 = vmul.f32 %v389, %v389
        %v422 = vmul.f32 %v390, %v390
        %v423 = vmul.f32 %v391, %v391
        %v424 = vmul.f32 %v392, %v392
        %v425 = vmul.f32 %v393, %v393
        %v426 = vmul.f32 %v394, %v394
        %v427 = vmul.f32 %v395, %v395
        %v428 = vadd.f32 %v396, %v397
        %429 = vadd.xlane.f32.xlu0 %v428
        %v430 = vpop.xlane.xlu0 %429
        %v431 = vadd.f32 %v398, %v399
        %432 = vadd.xlane.f32.xlu0 %v431
        %v433 = vpop.xlane.xlu0 %432
        %v434 = vadd.f32 %v400, %v401
        %435 = vadd.xlane.f32.xlu0 %v434
        %v436 = vpop.xlane.xlu0 %435
        %v437 = vadd.f32 %v402, %v403
        %438 = vadd.xlane.f32.xlu0 %v437
        %v439 = vpop.xlane.xlu0 %438
        %v440 = vadd.f32 %v404, %v405
        %441 = vadd.xlane.f32.xlu0 %v440
        %v442 = vpop.xlane.xlu0 %441
        %v443 = vadd.f32 %v406, %v407
        %444 = vadd.xlane.f32.xlu0 %v443
        %v445 = vpop.xlane.xlu0 %444
        %v446 = vadd.f32 %v408, %v409
        %447 = vadd.xlane.f32.xlu0 %v446
        %v448 = vpop.xlane.xlu0 %447
        %v449 = vadd.f32 %v410, %v411
        %450 = vadd.xlane.f32.xlu0 %v449
        %v451 = vpop.xlane.xlu0 %450
        %v452 = vadd.f32 %v412, %v413
        %453 = vadd.xlane.f32.xlu0 %v452
        %v454 = vpop.xlane.xlu0 %453
        %v455 = vadd.f32 %v414, %v415
        %456 = vadd.xlane.f32.xlu0 %v455
        %v457 = vpop.xlane.xlu0 %456
        %v458 = vadd.f32 %v416, %v417
        %459 = vadd.xlane.f32.xlu0 %v458
        %v460 = vpop.xlane.xlu0 %459
        %v461 = vadd.f32 %v418, %v419
        %462 = vadd.xlane.f32.xlu0 %v461
        %v463 = vpop.xlane.xlu0 %462
        %v464 = vadd.f32 %v420, %v421
        %465 = vadd.xlane.f32.xlu0 %v464
        %v466 = vpop.xlane.xlu0 %465
        %v467 = vadd.f32 %v422, %v423
        %468 = vadd.xlane.f32.xlu0 %v467
        %v469 = vpop.xlane.xlu0 %468
        %v470 = vadd.f32 %v424, %v425
        %471 = vadd.xlane.f32.xlu0 %v470
        %v472 = vpop.xlane.xlu0 %471
        %v473 = vadd.f32 %v426, %v427
        %474 = vadd.xlane.f32.xlu0 %v473
        %v475 = vpop.xlane.xlu0 %474
        %v476 = vrcp.pop 255.0
        %v477 = vmul.f32 %v430, %v476
        %v478 = vmul.f32 %v433, %v476
        %v479 = vmul.f32 %v436, %v476
        %v480 = vmul.f32 %v439, %v476
        %v481 = vmul.f32 %v442, %v476
        %v482 = vmul.f32 %v445, %v476
        %v483 = vmul.f32 %v448, %v476
        %v484 = vmul.f32 %v451, %v476
        %v485 = vmul.f32 %v454, %v476
        %v486 = vmul.f32 %v457, %v476
        %v487 = vmul.f32 %v460, %v476
        %v488 = vmul.f32 %v463, %v476
        %v489 = vmul.f32 %v466, %v476
        %v490 = vmul.f32 %v469, %v476
        %v491 = vmul.f32 %v472, %v476
        %v492 = vmul.f32 %v475, %v476
        %v493 = vrsqrt.pop %v477
        %v494 = vmul.f32 %v477, %v493
        %vm495 = vcmp.eq.f32.partialorder %v477, inf
        %v496 = vsel %vm495, %v477, %v494
        %vm497 = vcmp.eq.f32.partialorder %v477, 0.0
        %v498 = vand.u32 %v477, 2147483648
        %v499 = vsel %vm497, %v498, %v496
        %v500 = vrsqrt.pop %v478
        %v501 = vmul.f32 %v478, %v500
        %vm502 = vcmp.eq.f32.partialorder %v478, inf
        %v503 = vsel %vm502, %v478, %v501
        %vm504 = vcmp.eq.f32.partialorder %v478, 0.0
        %v505 = vand.u32 %v478, 2147483648
        %v506 = vsel %vm504, %v505, %v503
        %v507 = vrsqrt.pop %v479
        %v508 = vmul.f32 %v479, %v507
        %vm509 = vcmp.eq.f32.partialorder %v479, inf
        %v510 = vsel %vm509, %v479, %v508
        %vm511 = vcmp.eq.f32.partialorder %v479, 0.0
        %v512 = vand.u32 %v479, 2147483648
        %v513 = vsel %vm511, %v512, %v510
        %v514 = vrsqrt.pop %v480
        %v515 = vmul.f32 %v480, %v514
        %vm516 = vcmp.eq.f32.partialorder %v480, inf
        %v517 = vsel %vm516, %v480, %v515
        %vm518 = vcmp.eq.f32.partialorder %v480, 0.0
        %v519 = vand.u32 %v480, 2147483648
        %v520 = vsel %vm518, %v519, %v517
        %v521 = vrsqrt.pop %v481
        %v522 = vmul.f32 %v481, %v521
        %vm523 = vcmp.eq.f32.partialorder %v481, inf
        %v524 = vsel %vm523, %v481, %v522
        %vm525 = vcmp.eq.f32.partialorder %v481, 0.0
        %v526 = vand.u32 %v481, 2147483648
        %v527 = vsel %vm525, %v526, %v524
        %v528 = vrsqrt.pop %v482
        %v529 = vmul.f32 %v482, %v528
        %vm530 = vcmp.eq.f32.partialorder %v482, inf
        %v531 = vsel %vm530, %v482, %v529
        %vm532 = vcmp.eq.f32.partialorder %v482, 0.0
        %v533 = vand.u32 %v482, 2147483648
        %v534 = vsel %vm532, %v533, %v531
        %v535 = vrsqrt.pop %v483
        %v536 = vmul.f32 %v483, %v535
        %vm537 = vcmp.eq.f32.partialorder %v483, inf
        %v538 = vsel %vm537, %v483, %v536
        %vm539 = vcmp.eq.f32.partialorder %v483, 0.0
        %v540 = vand.u32 %v483, 2147483648
        %v541 = vsel %vm539, %v540, %v538
        %v542 = vrsqrt.pop %v484
        %v543 = vmul.f32 %v484, %v542
        %vm544 = vcmp.eq.f32.partialorder %v484, inf
        %v545 = vsel %vm544, %v484, %v543
        %vm546 = vcmp.eq.f32.partialorder %v484, 0.0
        %v547 = vand.u32 %v484, 2147483648
        %v548 = vsel %vm546, %v547, %v545
        %v549 = vrsqrt.pop %v485
        %v550 = vmul.f32 %v485, %v549
        %vm551 = vcmp.eq.f32.partialorder %v485, inf
        %v552 = vsel %vm551, %v485, %v550
        %vm553 = vcmp.eq.f32.partialorder %v485, 0.0
        %v554 = vand.u32 %v485, 2147483648
        %v555 = vsel %vm553, %v554, %v552
        %v556 = vrsqrt.pop %v486
        %v557 = vmul.f32 %v486, %v556
        %vm558 = vcmp.eq.f32.partialorder %v486, inf
        %v559 = vsel %vm558, %v486, %v557
        %vm560 = vcmp.eq.f32.partialorder %v486, 0.0
        %v561 = vand.u32 %v486, 2147483648
        %v562 = vsel %vm560, %v561, %v559
        %v563 = vrsqrt.pop %v487
        %v564 = vmul.f32 %v487, %v563
        %vm565 = vcmp.eq.f32.partialorder %v487, inf
        %v566 = vsel %vm565, %v487, %v564
        %vm567 = vcmp.eq.f32.partialorder %v487, 0.0
        %v568 = vand.u32 %v487, 2147483648
        %v569 = vsel %vm567, %v568, %v566
        %v570 = vrsqrt.pop %v488
        %v571 = vmul.f32 %v488, %v570
        %vm572 = vcmp.eq.f32.partialorder %v488, inf
        %v573 = vsel %vm572, %v488, %v571
        %vm574 = vcmp.eq.f32.partialorder %v488, 0.0
        %v575 = vand.u32 %v488, 2147483648
        %v576 = vsel %vm574, %v575, %v573
        %v577 = vrsqrt.pop %v489
        %v578 = vmul.f32 %v489, %v577
        %vm579 = vcmp.eq.f32.partialorder %v489, inf
        %v580 = vsel %vm579, %v489, %v578
        %vm581 = vcmp.eq.f32.partialorder %v489, 0.0
        %v582 = vand.u32 %v489, 2147483648
        %v583 = vsel %vm581, %v582, %v580
        %v584 = vrsqrt.pop %v490
        %v585 = vmul.f32 %v490, %v584
        %vm586 = vcmp.eq.f32.partialorder %v490, inf
        %v587 = vsel %vm586, %v490, %v585
        %vm588 = vcmp.eq.f32.partialorder %v490, 0.0
        %v589 = vand.u32 %v490, 2147483648
        %v590 = vsel %vm588, %v589, %v587
        %v591 = vrsqrt.pop %v491
        %v592 = vmul.f32 %v491, %v591
        %vm593 = vcmp.eq.f32.partialorder %v491, inf
        %v594 = vsel %vm593, %v491, %v592
        %vm595 = vcmp.eq.f32.partialorder %v491, 0.0
        %v596 = vand.u32 %v491, 2147483648
        %v597 = vsel %vm595, %v596, %v594
        %v598 = vrsqrt.pop %v492
        %v599 = vmul.f32 %v492, %v598
        %vm600 = vcmp.eq.f32.partialorder %v492, inf
        %v601 = vsel %vm600, %v492, %v599
        %vm602 = vcmp.eq.f32.partialorder %v492, 0.0
        %v603 = vand.u32 %v492, 2147483648
        %v604 = vsel %vm602, %v603, %v601
        %v605 = vadd.f32 %v499, 1e-06
        %v606 = vadd.f32 %v506, 1e-06
        %v607 = vadd.f32 %v513, 1e-06
        %v608 = vadd.f32 %v520, 1e-06
        %v609 = vadd.f32 %v527, 1e-06
        %v610 = vadd.f32 %v534, 1e-06
        %v611 = vadd.f32 %v541, 1e-06
        %v612 = vadd.f32 %v548, 1e-06
        %v613 = vadd.f32 %v555, 1e-06
        %v614 = vadd.f32 %v562, 1e-06
        %v615 = vadd.f32 %v569, 1e-06
        %v616 = vadd.f32 %v576, 1e-06
        %v617 = vadd.f32 %v583, 1e-06
        %v618 = vadd.f32 %v590, 1e-06
        %v619 = vadd.f32 %v597, 1e-06
        %v620 = vadd.f32 %v604, 1e-06
        %v621 = vrcp.pop %v605
        %v622 = vmul.f32 1.0, %v621
        %v623 = vrcp.pop %v606
        %v624 = vmul.f32 1.0, %v623
        %v625 = vrcp.pop %v607
        %v626 = vmul.f32 1.0, %v625
        %v627 = vrcp.pop %v608
        %v628 = vmul.f32 1.0, %v627
        %v629 = vrcp.pop %v609
        %v630 = vmul.f32 1.0, %v629
        %v631 = vrcp.pop %v610
        %v632 = vmul.f32 1.0, %v631
        %v633 = vrcp.pop %v611
        %v634 = vmul.f32 1.0, %v633
        %v635 = vrcp.pop %v612
        %v636 = vmul.f32 1.0, %v635
        %v637 = vrcp.pop %v613
        %v638 = vmul.f32 1.0, %v637
        %v639 = vrcp.pop %v614
        %v640 = vmul.f32 1.0, %v639
        %v641 = vrcp.pop %v615
        %v642 = vmul.f32 1.0, %v641
        %v643 = vrcp.pop %v616
        %v644 = vmul.f32 1.0, %v643
        %v645 = vrcp.pop %v617
        %v646 = vmul.f32 1.0, %v645
        %v647 = vrcp.pop %v618
        %v648 = vmul.f32 1.0, %v647
        %v649 = vrcp.pop %v619
        %v650 = vmul.f32 1.0, %v649
        %v651 = vrcp.pop %v620
        %v652 = vmul.f32 1.0, %v651
        %v653 = vmul.f32 %v364, %v622
        %v654 = vmul.f32 %v365, %v622
        %v655 = vmul.f32 %v366, %v624
        %v656 = vmul.f32 %v367, %v624
        %v657 = vmul.f32 %v368, %v626
        %v658 = vmul.f32 %v369, %v626
        %v659 = vmul.f32 %v370, %v628
        %v660 = vmul.f32 %v371, %v628
        %v661 = vmul.f32 %v372, %v630
        %v662 = vmul.f32 %v373, %v630
        %v663 = vmul.f32 %v374, %v632
        %v664 = vmul.f32 %v375, %v632
        %v665 = vmul.f32 %v376, %v634
        %v666 = vmul.f32 %v377, %v634
        %v667 = vmul.f32 %v378, %v636
        %v668 = vmul.f32 %v379, %v636
        %v669 = vmul.f32 %v380, %v638
        %v670 = vmul.f32 %v381, %v638
        %v671 = vmul.f32 %v382, %v640
        %v672 = vmul.f32 %v383, %v640
        %v673 = vmul.f32 %v384, %v642
        %v674 = vmul.f32 %v385, %v642
        %v675 = vmul.f32 %v386, %v644
        %v676 = vmul.f32 %v387, %v644
        %v677 = vmul.f32 %v388, %v646
        %v678 = vmul.f32 %v389, %v646
        %v679 = vmul.f32 %v390, %v648
        %v680 = vmul.f32 %v391, %v648
        %v681 = vmul.f32 %v392, %v650
        %v682 = vmul.f32 %v393, %v650
        %v683 = vmul.f32 %v394, %v652
        %v684 = vmul.f32 %v395, %v652
        %v686 = vlaneseq
        %v687 = vshrl.u32 %v686, 7
        %v688 = vsub.s32 0, %v687
        %v689 = vrot.slane %v297, %v688
        %v690 = vlaneseq
        %v691 = vshrl.u32 %v690, 7
        %v692 = vsub.s32 1, %v691
        %v693 = vrot.slane %v297, %v692
        %v696 = vmul.f32 %v653, %v689
        %v697 = vmul.f32 %v654, %v693
        %v698 = vmul.f32 %v655, %v689
        %v699 = vmul.f32 %v656, %v693
        %v700 = vmul.f32 %v657, %v689
        %v701 = vmul.f32 %v658, %v693
        %v702 = vmul.f32 %v659, %v689
        %v703 = vmul.f32 %v660, %v693
        %v704 = vmul.f32 %v661, %v689
        %v705 = vmul.f32 %v662, %v693
        %v706 = vmul.f32 %v663, %v689
        %v707 = vmul.f32 %v664, %v693
        %v708 = vmul.f32 %v665, %v689
        %v709 = vmul.f32 %v666, %v693
        %v710 = vmul.f32 %v667, %v689
        %v711 = vmul.f32 %v668, %v693
        %v712 = vmul.f32 %v669, %v689
        %v713 = vmul.f32 %v670, %v693
        %v714 = vmul.f32 %v671, %v689
        %v715 = vmul.f32 %v672, %v693
        %v716 = vmul.f32 %v673, %v689
        %v717 = vmul.f32 %v674, %v693
        %v718 = vmul.f32 %v675, %v689
        %v719 = vmul.f32 %v676, %v693
        %v720 = vmul.f32 %v677, %v689
        %v721 = vmul.f32 %v678, %v693
        %v722 = vmul.f32 %v679, %v689
        %v723 = vmul.f32 %v680, %v693
        %v724 = vmul.f32 %v681, %v689
        %v725 = vmul.f32 %v682, %v693
        %v726 = vmul.f32 %v683, %v689
        %v727 = vmul.f32 %v684, %v693
        %v729 = vlaneseq
        %v730 = vshrl.u32 %v729, 7
        %v731 = vsub.s32 0, %v730
        %v732 = vrot.slane %v298, %v731
        %v733 = vlaneseq
        %v734 = vshrl.u32 %v733, 7
        %v735 = vsub.s32 1, %v734
        %v736 = vrot.slane %v298, %v735
        %v739 = vadd.f32 %v696, %v732
        %v740 = vadd.f32 %v697, %v736
        %v741 = vadd.f32 %v698, %v732
        %v742 = vadd.f32 %v699, %v736
        %v743 = vadd.f32 %v700, %v732
        %v744 = vadd.f32 %v701, %v736
        %v745 = vadd.f32 %v702, %v732
        %v746 = vadd.f32 %v703, %v736
        %v747 = vadd.f32 %v704, %v732
        %v748 = vadd.f32 %v705, %v736
        %v749 = vadd.f32 %v706, %v732
        %v750 = vadd.f32 %v707, %v736
        %v751 = vadd.f32 %v708, %v732
        %v752 = vadd.f32 %v709, %v736
        %v753 = vadd.f32 %v710, %v732
        %v754 = vadd.f32 %v711, %v736
        %v755 = vadd.f32 %v712, %v732
        %v756 = vadd.f32 %v713, %v736
        %v757 = vadd.f32 %v714, %v732
        %v758 = vadd.f32 %v715, %v736
        %v759 = vadd.f32 %v716, %v732
        %v760 = vadd.f32 %v717, %v736
        %v761 = vadd.f32 %v718, %v732
        %v762 = vadd.f32 %v719, %v736
        %v763 = vadd.f32 %v720, %v732
        %v764 = vadd.f32 %v721, %v736
        %v765 = vadd.f32 %v722, %v732
        %v766 = vadd.f32 %v723, %v736
        %v767 = vadd.f32 %v724, %v732
        %v768 = vadd.f32 %v725, %v736
        %v769 = vadd.f32 %v726, %v732
        %v770 = vadd.f32 %v727, %v736
        %771 = vst [vmem:[%s258] sm:$0xff] %v739
        %772 = vst [vmem:[%s258 + $0x8] sm:$0xff] %v740
        %773 = vst [vmem:[%s258 + $0x10] sm:$0xff] %v741
        %774 = vst [vmem:[%s258 + $0x18] sm:$0xff] %v742
        %775 = vst [vmem:[%s258 + $0x20] sm:$0xff] %v743
        %776 = vst [vmem:[%s258 + $0x28] sm:$0xff] %v744
        %777 = vst [vmem:[%s258 + $0x30] sm:$0xff] %v745
        %778 = vst [vmem:[%s258 + $0x38] sm:$0xff] %v746
        %779 = vst [vmem:[%s258 + $0x40] sm:$0xff] %v747
        %780 = vst [vmem:[%s258 + $0x48] sm:$0xff] %v748
        %781 = vst [vmem:[%s258 + $0x50] sm:$0xff] %v749
        %782 = vst [vmem:[%s258 + $0x58] sm:$0xff] %v750
        %783 = vst [vmem:[%s258 + $0x60] sm:$0xff] %v751
        %784 = vst [vmem:[%s258 + $0x68] sm:$0xff] %v752
        %785 = vst [vmem:[%s258 + $0x70] sm:$0xff] %v753
        %786 = vst [vmem:[%s258 + $0x78] sm:$0xff] %v754
        %787 = vst [vmem:[%s258 + $0x80] sm:$0xff] %v755
        %788 = vst [vmem:[%s258 + $0x88] sm:$0xff] %v756
        %789 = vst [vmem:[%s258 + $0x90] sm:$0xff] %v757
        %790 = vst [vmem:[%s258 + $0x98] sm:$0xff] %v758
        %791 = vst [vmem:[%s258 + $0xa0] sm:$0xff] %v759
        %792 = vst [vmem:[%s258 + $0xa8] sm:$0xff] %v760
        %793 = vst [vmem:[%s258 + $0xb0] sm:$0xff] %v761
        %794 = vst [vmem:[%s258 + $0xb8] sm:$0xff] %v762
        %795 = vst [vmem:[%s258 + $0xc0] sm:$0xff] %v763
        %796 = vst [vmem:[%s258 + $0xc8] sm:$0xff] %v764
        %797 = vst [vmem:[%s258 + $0xd0] sm:$0xff] %v765
        %798 = vst [vmem:[%s258 + $0xd8] sm:$0xff] %v766
        %799 = vst [vmem:[%s258 + $0xe0] sm:$0xff] %v767
        %800 = vst [vmem:[%s258 + $0xe8] sm:$0xff] %v768
        %801 = vst [vmem:[%s258 + $0xf0] sm:$0xff] %v769
        %802 = vst [vmem:[%s258 + $0xf8] sm:$0xff] %v770
        %s803 = sand.u32 %s125, 1
        %s804 = scalar_lea.sflag [#allocation4], %s803
        %s805 = sand.u32 %s125, 1
        %s806 = smul.addr %s805, 256
        %s807 = scalar_lea.vmem [#allocation7], %s806
        // Predicated region
        $region41: #{tpu_custom_call.1} parent=31 // pred_check
          %p808 = pneg %p135
        $region42: #{tpu_custom_call.1} parent=31 // pred_check_branch
          %810 = sbr.rel (%p808) target = $region44
        $region43: #{tpu_custom_call.1} parent=31 // pred_region
          %s811 = smul.u32 16, %s28
          %s813 = ssub.s32 4096, 4096
          %814 = vsyncadd %s804, %s813
          %s815 = smul.addr %s811, 2
          %s816 = smul.addr %s27, 64
          %s817 = sadd.s32 %s815, %s816
          %s818 = smul.addr %s817, 128
          %s819 = scalar_lea.hbm %s3, %s818
          %s820 = sshll.u32 %s807, 4
          %s821 = int_to_ptr.vmem [resolvable:$true] %s820
          %826 = dma.vmem_to_hbm [thread:$0]  %s821, 4096, %s819, %s804, 256, 256, 16
        $region44: #{tpu_custom_call.1} parent=31 // pred_fallthru
          _
      $region32: #{tpu_custom_call.1} parent=5 // pred_fallthru
        _
      %p827 = scmp.le.s32.totalorder 2, %s18
      // Predicated region
      $region45: #{tpu_custom_call.1} parent=5 // pred_check
        %p828 = pneg %p827
      $region46: #{tpu_custom_call.1} parent=5 // pred_check_branch
        %830 = sbr.rel (%p828) target = $region48
      $region47: #{tpu_custom_call.1} parent=5 // pred_region
        %s831 = ssub.s32 %s18, 2
        // Predicated region
        $region49: #{tpu_custom_call.1} parent=47 // pred_check
          %p832 = pneg %p141
        $region50: #{tpu_custom_call.1} parent=47 // pred_check_branch
          %834 = sbr.rel (%p832) target = $region52
        $region51: #{tpu_custom_call.1} parent=47 // pred_region
          %s835 = sand.u32 %s126, 1
          %s836 = scalar_lea.sflag [#allocation4], %s835
          %s837 = sand.u32 %s126, 1
          %s838 = smul.addr %s837, 256
          %s839 = scalar_lea.vmem [#allocation7], %s838
          %840 = dma.done %s836, 4096
        $region52: #{tpu_custom_call.1} parent=47 // pred_fallthru
          _
      $region48: #{tpu_custom_call.1} parent=5 // pred_fallthru
        _
    $region6: #{tpu_custom_call.1} parent=1 // loop_footer
      %s22 = sadd.s32 1, %s18
    $region7: #{tpu_custom_call.1} parent=1 // loop_footer_branch
      %17 = sbr.rel target = $region3
    $region8: #{tpu_custom_call.1} parent=1 // loop_exit
      _
    %841 = vsyncpa [#allocation3], 1
    %s842 = scalar_lea.sflag [#allocation3], 1
    %843 = vsyncpa %s842, 1
    %844 = vsyncpa [#allocation6], 1
    %s845 = scalar_lea.sflag [#allocation6], 1
    %846 = vsyncpa %s845, 1
    %847 = vsyncpa [#allocation4], 1
    %s848 = scalar_lea.sflag [#allocation4], 1
    %849 = vsyncpa %s848, 1

</llo_original>
